<compile_context>
chip_gen: v6e
topology: v6e:2x2x1
jax: 0.10.0
libtpu: 0.0.40
codegen_flags: <defaults>
</compile_context>

<pallas_src>
import jax
import jax.numpy as jnp
import numpy as np
from jax import lax
from jax.experimental import pallas as pl
from jax.experimental.pallas import tpu as pltpu

NUM_TAGS = 6
TAG_PAD = 8          # tag axis padded to a full f32 sublane group
CLAMP = 80.0


def _ceil_div(a, b):
    return -(-a // b)


def _round_up(x, m):
    return _ceil_div(x, m) * m


def _choose_seq_tile(n_tokens, H, itemsize, *, max_tile=2048,
                     hidden_budget_bytes=8 * 1024 * 1024):
    """Largest multiple-of-128 tile whose double-buffered hidden block fits the budget.

    Default 8 MiB budget is safe under the v5e 16 MiB scoped-VMEM default.
    For v6e raise hidden_budget_bytes (and vmem_limit_bytes) to reach 1024-2048
    tiles; on v7x keep tiles <= 1024 (64 MiB physical VMEM).
    """
    t = hidden_budget_bytes // max(1, 2 * H * itemsize)   # 2x = double buffer
    t = max(128, (t // 128) * 128)
    t = min(t, max_tile, _round_up(max(1, n_tokens), 128))
    return int(t)


def _compiler_params(dimension_semantics, vmem_limit_bytes):
    kw = dict(dimension_semantics=dimension_semantics)
    if vmem_limit_bytes is not None:
        kw["vmem_limit_bytes"] = vmem_limit_bytes
    return pltpu.CompilerParams(**kw)


# ---------------------------------------------------------------------------
# Kernels
# ---------------------------------------------------------------------------
def _dec2enc_loss_kernel(h_ref, wt_ref, bt_ref, labels_ref, mask_ref,
                         pos_ref, neg_ref, acc_pos_ref, acc_neg_ref):
    """Training path: partial (pos, neg) sums per (batch row, S-split)."""
    s = pl.program_id(2)

    @pl.when(s == 0)
    def _():
        acc_pos_ref[...] = jnp.zeros_like(acc_pos_ref)
        acc_neg_ref[...] = jnp.zeros_like(acc_neg_ref)

    # Lane-dense logits tile: (TAG_PAD, tS) = W_t(TAG_PAD, H) . h(tS, H)^T.
    # Contraction (last, last) — no in-kernel transposes; hidden stays in its
    # input dtype (bf16), f32 MXU accumulation.
    logits_t = lax.dot_general(
        wt_ref[...], h_ref[...],
        dimension_numbers=(((1,), (1,)), ((), ())),
        preferred_element_type=jnp.float32) + bt_ref[...]          # (TAG_PAD, tS)

    m = mask_ref[...].astype(jnp.float32)                          # (1, tS)
    labels = labels_ref[...].astype(jnp.float32)                   # (TAG_PAD, tS)

    # Select-zero the logits wherever mask == 0 BEFORE exp.  This (a) matches
    # the reference (those positions contribute 0 anyway) and (b) makes the
    # kernel immune to garbage/NaN bf16 reads from the unpadded hidden tail.
    valid = m > 0.0
    lc = jnp.where(valid, jnp.clip(logits_t, -CLAMP, CLAMP), 0.0)
    e_pos = jnp.exp(lc)                                            # exp(+lc)
    e_neg = pl.reciprocal(e_pos, approx=True)                      # exp(-lc), EUP slot

    lm = labels * m
    acc_pos_ref[...] += e_neg * lm                                 # mask*labels
    acc_neg_ref[...] += e_pos * (m - lm)                           # mask*(1-labels)

    @pl.when(s == pl.num_programs(2) - 1)
    def _():
        pos_ref[...] = jnp.sum(acc_pos_ref[...], axis=1, keepdims=True)
        neg_ref[...] = jnp.sum(acc_neg_ref[...], axis=1, keepdims=True)


def _dec2enc_logits_kernel(h_ref, wt_ref, bt_ref, out_ref):
    """Inference path: lane-dense (TAG_PAD, tS) logits store, no loss math."""
    out_ref[...] = (lax.dot_general(
        wt_ref[...], h_ref[...],
        dimension_numbers=(((1,), (1,)), ((), ())),
        preferred_element_type=jnp.float32) + bt_ref[...]).astype(out_ref.dtype)


# ---------------------------------------------------------------------------
# Wrappers
# ---------------------------------------------------------------------------
def _prep_params(weight, bias, dtype):
    """weight (H, 6) == torch nn.Linear.weight.T, bias (1, 6) -> (8, H)/(8, 1)."""
    H = weight.shape[0]
    w_t = jnp.zeros((TAG_PAD, H), dtype).at[:NUM_TAGS, :].set(
        jnp.transpose(weight).astype(dtype))
    b_t = jnp.zeros((TAG_PAD, 1), jnp.float32).at[:NUM_TAGS, 0].set(
        jnp.reshape(bias, (NUM_TAGS,)).astype(jnp.float32))
    return w_t, b_t


def dec2enc_loss(hidden, weight, bias, labels, mask, *, seq_tile=None,
                 num_splits=None, hidden_budget_bytes=8 * 1024 * 1024,
                 vmem_limit_bytes=None):
    """Training branch: masked exponential-margin loss (scalar)."""
    B, S, H = hidden.shape
    itemsize = hidden.dtype.itemsize
    if seq_tile is None:
        seq_tile = _choose_seq_tile(S, H, itemsize,
                                    hidden_budget_bytes=hidden_budget_bytes)
    n_tiles = _ceil_div(S, seq_tile)
    if num_splits is None:
        num_splits = 2 if n_tiles >= 2 else 1       # keep both v7x TCs busy
    num_splits = max(1, min(num_splits, n_tiles))
    ts = _ceil_div(n_tiles, num_splits)             # S-tiles per split
    s_pad = num_splits * ts * seq_tile
    last_tile = n_tiles - 1

    # Only the small label/mask streams are padded + transposed (bf16 is exact
    # for 0/1 and halves their HBM traffic); hidden is streamed unpadded.
    labels_t = jnp.zeros((B, TAG_PAD, s_pad), jnp.bfloat16).at[:, :NUM_TAGS, :S].set(
        jnp.transpose(labels, (0, 2, 1)).astype(jnp.bfloat16))
    mask3 = jnp.zeros((B, 1, s_pad), jnp.bfloat16).at[:, 0, :S].set(
        mask.astype(jnp.bfloat16))

    w_t, b_t = _prep_params(weight, bias, hidden.dtype)

    cost = pl.CostEstimate(
        flops=2 * B * s_pad * H * TAG_PAD + 8 * B * s_pad * TAG_PAD,
        transcendentals=2 * B * s_pad * TAG_PAD,
        bytes_accessed=(B * S * H * itemsize
                        + B * TAG_PAD * s_pad * 2 + B * s_pad * 2
                        + TAG_PAD * H * itemsize
                        + 2 * B * num_splits * TAG_PAD * 4))

    pos, neg = pl.pallas_call(
        _dec2enc_loss_kernel,
        out_shape=(jax.ShapeDtypeStruct((B, num_splits, TAG_PAD, 1), jnp.float32),
                   jax.ShapeDtypeStruct((B, num_splits, TAG_PAD, 1), jnp.float32)),
        grid_spec=pltpu.PrefetchScalarGridSpec(
            num_scalar_prefetch=0,
            grid=(B, num_splits, ts),
            in_specs=[
                # clamp so the hidden block is never entirely out of bounds;
                # any duplicated read is killed by the zero-padded mask.
                pl.BlockSpec((None, seq_tile, H),
                             lambda b, p, s: (b, jnp.minimum(p * ts + s, last_tile), 0)),
                pl.BlockSpec((TAG_PAD, H), lambda b, p, s: (0, 0)),
                pl.BlockSpec((TAG_PAD, 1), lambda b, p, s: (0, 0)),
                pl.BlockSpec((None, TAG_PAD, seq_tile),
                             lambda b, p, s: (b, 0, p * ts + s)),
                pl.BlockSpec((None, 1, seq_tile),
                             lambda b, p, s: (b, 0, p * ts + s)),
            ],
            out_specs=[
                pl.BlockSpec((None, None, TAG_PAD, 1), lambda b, p, s: (b, p, 0, 0)),
                pl.BlockSpec((None, None, TAG_PAD, 1), lambda b, p, s: (b, p, 0, 0)),
            ],
            scratch_shapes=[pltpu.VMEM((TAG_PAD, seq_tile), jnp.float32),
                            pltpu.VMEM((TAG_PAD, seq_tile), jnp.float32)],
        ),
        compiler_params=_compiler_params(("parallel", "parallel", "arbitrary"),
                                         vmem_limit_bytes),
        cost_estimate=cost,
    )(hidden, w_t, b_t, labels_t, mask3)

    pos = jnp.sum(pos[:, :, :NUM_TAGS, 0], axis=1)        # (B, 6) combine splits
    neg = jnp.sum(neg[:, :, :NUM_TAGS, 0], axis=1)
    per = jnp.log(1.0 + pos) + jnp.log(1.0 + neg)          # log(1+x), as in torch
    return jnp.sum(jnp.mean(per, axis=0))                  # sum over tags of batch-mean


def dec2enc_logits(hidden, weight, bias, *, seq_tile=None,
                   hidden_budget_bytes=8 * 1024 * 1024, vmem_limit_bytes=None):
    """Inference branch: tags-major (B, 6, S) logits from the linear head."""
    B, S, H = hidden.shape
    itemsize = hidden.dtype.itemsize
    T = B * S                                   # collapse batch & sequence
    if seq_tile is None:
        seq_tile = _choose_seq_tile(T, H, itemsize,
                                    hidden_budget_bytes=hidden_budget_bytes)
    n_t = _ceil_div(T, seq_tile)
    t_pad = n_t * seq_tile

    h2d = jnp.reshape(hidden, (T, H))           # contiguous collapse: no copy
    w_t, b_t = _prep_params(weight, bias, hidden.dtype)

    cost = pl.CostEstimate(
        flops=2 * t_pad * H * TAG_PAD,
        transcendentals=0,
        bytes_accessed=T * H * itemsize + TAG_PAD * H * itemsize + TAG_PAD * t_pad * 4)

    logits_flat = pl.pallas_call(
        _dec2enc_logits_kernel,
        out_shape=jax.ShapeDtypeStruct((TAG_PAD, t_pad), jnp.float32),
        grid_spec=pltpu.PrefetchScalarGridSpec(
            num_scalar_prefetch=0,
            grid=(n_t,),
            in_specs=[
                pl.BlockSpec((seq_tile, H), lambda t: (t, 0)),
                pl.BlockSpec((TAG_PAD, H), lambda t: (0, 0)),
                pl.BlockSpec((TAG_PAD, 1), lambda t: (0, 0)),
            ],
            out_specs=pl.BlockSpec((TAG_PAD, seq_tile), lambda t: (0, t)),
        ),
        compiler_params=_compiler_params(("parallel",), vmem_limit_bytes),
        cost_estimate=cost,
    )(h2d, w_t, b_t)

    # Only the tiny (8, B*S) logit slab is sliced / reshaped here — no full
    # (B, S, 6) transpose pass over HBM; span_decode consumes tags-major.
    logits = jnp.reshape(logits_flat[:NUM_TAGS, :T], (NUM_TAGS, B, S))
    return jnp.transpose(logits, (1, 0, 2))     # (B, 6, S)


def span_decode(logits_bts):
    """Host-side span extraction on tags-major logits (B, NUM_TAGS, S).

    Identical decisions to the torch module's no-labels branch (sign checks).
    """
    span_preds = []
    B, T, S = logits_bts.shape
    for b in range(B):
        span_pred = []
        for i in range(T // 2):
            span_pred_i = []
            start_flag = None
            starts = logits_bts[b, 2 * i]
            ends = logits_bts[b, 2 * i + 1]
            for idx in range(S):
                if starts[idx] > 0:
                    start_flag = idx
                if start_flag is not None and ends[idx] > 0:
                    span_pred_i.append([start_flag, idx])
                    start_flag = None
            span_pred.append(span_pred_i)
        span_preds.append(span_pred)
    return span_preds


def dec2enc_forward(hidden_states, attention_mask, weight, bias, labels=None):
    """Mirrors Dec2Enc.forward (hidden_states stand in for the backbone output)."""
    if labels is None:
        logits = dec2enc_logits(hidden_states, weight, bias)
        return span_decode(np.asarray(jax.device_get(logits), np.float32))
    return dec2enc_loss(hidden_states, weight, bias, labels, attention_mask)


# ---------------------------------------------------------------------------
# References (float64 numpy, same bf16-rounded parameters as the kernel)
# ---------------------------------------------------------------------------
def _reference_logits_np(hidden, weight, bias):
    h = np.asarray(hidden.astype(jnp.float32), np.float64)
    w = np.asarray(weight.astype(hidden.dtype).astype(jnp.float32), np.float64)
    b = np.asarray(bias, np.float64).reshape(1, 1, NUM_TAGS)
    return np.einsum("bsh,ho->bso", h, w) + b            # (B, S, 6)


def _reference_loss_np(hidden, weight, bias, labels, mask):
    logits = _reference_logits_np(hidden, weight, bias)
    lc = np.clip(logits, -CLAMP, CLAMP)
    y = np.asarray(labels, np.float64)
    m = np.asarray(mask, np.float64)[:, :, None]
    pos = np.sum(np.exp(-lc) * y * m, axis=1)
    neg = np.sum(np.exp(lc) * (1.0 - y) * m, axis=1)
    per = np.log(1.0 + pos) + np.log(1.0 + neg)
    return float(np.sum(np.mean(per, axis=0)))


if __name__ == "__main__":
    key = jax.random.PRNGKey(0)
    k1, k2, k3, k4 = jax.random.split(key, 4)

    # Small stand-in shapes.  S is deliberately NOT a multiple of the tile so
    # the in-kernel ragged-tail masking (no hidden padding pass) is exercised.
    B, S, H = 2, 300, 128
    # TODO(synk): synthetic bf16 hidden states stand in for the HF backbone's
    # outputs.hidden_states[-1] (no Pallas equivalent of the pretrained model).
    hidden = jax.random.normal(k1, (B, S, H), dtype=jnp.float32).astype(jnp.bfloat16)
    weight = 0.05 * jax.random.normal(k2, (H, NUM_TAGS), dtype=jnp.float32)
    bias = 0.01 * jax.random.normal(k3, (1, NUM_TAGS), dtype=jnp.float32)
    labels = (jax.random.uniform(k4, (B, S, NUM_TAGS)) > 0.5).astype(jnp.float32)
    mask = jnp.ones((B, S), jnp.float32).at[1, 230:].set(0.0)   # padding on row 1

    ref_loss = _reference_loss_np(hidden, weight, bias, labels, mask)

    # (a) Training branch, default (large) seq tile: single S tile, no split.
    loss = dec2enc_forward(hidden, mask, weight, bias, labels=labels)
    loss = jax.block_until_ready(loss)
    assert np.allclose(float(loss), ref_loss, rtol=1e-3, atol=1e-3), (float(loss), ref_loss)

    # (b) Training branch, small tile: multi-tile accumulation + 2-way parallel
    #     S-split (the v7x megacore path), still bit-consistent with the reference.
    loss_b = jax.block_until_ready(
        dec2enc_loss(hidden, weight, bias, labels, mask, seq_tile=128))
    assert np.allclose(float(loss_b), ref_loss, rtol=1e-3, atol=1e-3), (float(loss_b), ref_loss)

    # Inference branch: collapsed-token logits kernel (tags-major output).
    logits = jax.block_until_ready(dec2enc_logits(hidden, weight, bias))
    ref_logits = _reference_logits_np(hidden, weight, bias)            # (B, S, 6)
    assert np.allclose(np.transpose(np.asarray(logits), (0, 2, 1)), ref_logits,
                       rtol=1e-3, atol=1e-3)

    spans = dec2enc_forward(hidden, mask, weight, bias, labels=None)
    assert isinstance(spans, list) and len(spans) == B and len(spans[0]) == NUM_TAGS // 2

    print("KERNEL_OK")
</pallas_src>

<mosaic_0001>
module attributes {stable_mosaic.version = 11 : i64} {
  func.func @_dec2enc_loss_kernel(%arg0: i32, %arg1: i32, %arg2: i32, %arg3: memref<1x384x128xbf16, #tpu.memory_space<vmem>>, %arg4: memref<8x128xbf16, #tpu.memory_space<vmem>>, %arg5: memref<8x1xf32, #tpu.memory_space<vmem>>, %arg6: memref<1x8x384xbf16, #tpu.memory_space<vmem>>, %arg7: memref<1x1x384xbf16, #tpu.memory_space<vmem>>, %arg8: memref<1x1x8x1xf32, #tpu.memory_space<vmem>>, %arg9: memref<1x1x8x1xf32, #tpu.memory_space<vmem>>, %arg10: memref<8x384xf32, #tpu.memory_space<vmem>>, %arg11: memref<8x384xf32, #tpu.memory_space<vmem>>) attributes {dimension_semantics = [#tpu.dimension_semantics<parallel>, #tpu.dimension_semantics<parallel>, #tpu.dimension_semantics<arbitrary>], iteration_bounds = array<i64: 2, 1, 1>, scalar_prefetch = 0 : i64, scratch_operands = 2 : i64, tpu.core_type = #tpu.core_type<tc>, window_params = [{transform_indices = @transform_0, window_bounds = array<i64: 1, 384, 128>}, {pipeline_mode = #tpu.pipeline_mode<synchronous>, transform_indices = @transform_1, window_bounds = array<i64: 8, 128>}, {pipeline_mode = #tpu.pipeline_mode<synchronous>, transform_indices = @transform_2, window_bounds = array<i64: 8, 1>}, {transform_indices = @transform_3, window_bounds = array<i64: 1, 8, 384>}, {transform_indices = @transform_4, window_bounds = array<i64: 1, 1, 384>}, {transform_indices = @transform_5, window_bounds = array<i64: 1, 1, 8, 1>}, {transform_indices = @transform_6, window_bounds = array<i64: 1, 1, 8, 1>}]} {
    %c0_i32 = arith.constant 0 : i32
    %0 = arith.cmpi eq, %arg2, %c0_i32 : i32
    %1 = arith.extui %0 : i1 to i32
    %c0_i32_0 = arith.constant 0 : i32
    %2 = arith.cmpi ne, %1, %c0_i32_0 : i32
    scf.if %2 {
      %cst_27 = arith.constant 0.000000e+00 : f32
      %43 = vector.broadcast %cst_27 : f32 to vector<8x384xf32>
      %c0_28 = arith.constant 0 : index
      %c0_29 = arith.constant 0 : index
      %44 = vector.load %arg10[%c0_28, %c0_29] : memref<8x384xf32, #tpu.memory_space<vmem>>, vector<8x384xf32>
      tpu.vector_store %arg10[%c0_28, %c0_29], %43 {strides = array<i32>} : memref<8x384xf32, #tpu.memory_space<vmem>>, vector<8x384xf32>,
      %cst_30 = arith.constant 0.000000e+00 : f32
      %45 = vector.broadcast %cst_30 : f32 to vector<8x384xf32>
      %c0_31 = arith.constant 0 : index
      %c0_32 = arith.constant 0 : index
      %46 = vector.load %arg11[%c0_31, %c0_32] : memref<8x384xf32, #tpu.memory_space<vmem>>, vector<8x384xf32>
      tpu.vector_store %arg11[%c0_31, %c0_32], %45 {strides = array<i32>} : memref<8x384xf32, #tpu.memory_space<vmem>>, vector<8x384xf32>,
    } else {
    }
    %c0 = arith.constant 0 : index
    %c0_1 = arith.constant 0 : index
    %3 = vector.load %arg4[%c0, %c0_1] : memref<8x128xbf16, #tpu.memory_space<vmem>>, vector<8x128xbf16>
    %c0_2 = arith.constant 0 : index
    %c0_3 = arith.constant 0 : index
    %c0_4 = arith.constant 0 : index
    %4 = vector.load %arg3[%c0_2, %c0_3, %c0_4] : memref<1x384x128xbf16, #tpu.memory_space<vmem>>, vector<1x384x128xbf16>
    %5 = vector.shape_cast %4 : vector<1x384x128xbf16> to vector<384x128xbf16>
    %cst = arith.constant dense<0.000000e+00> : vector<8x384xf32>
    %6 = tpu.matmul %3, %5, %cst {dimension_numbers = #tpu.dot_dimension_numbers<[1], [1], [0], [0], [0, 0, 1, 0], [], []>} : vector<8x128xbf16>, vector<384x128xbf16>, vector<8x384xf32> -> vector<8x384xf32>
    %c0_5 = arith.constant 0 : index
    %c0_6 = arith.constant 0 : index
    %7 = vector.load %arg5[%c0_5, %c0_6] : memref<8x1xf32, #tpu.memory_space<vmem>>, vector<8x1xf32>
    %8 = vector.broadcast %7 : vector<8x1xf32> to vector<8x384xf32>
    %9 = arith.addf %6, %8 : vector<8x384xf32>
    %c0_7 = arith.constant 0 : index
    %c0_8 = arith.constant 0 : index
    %c0_9 = arith.constant 0 : index
    %10 = vector.load %arg7[%c0_7, %c0_8, %c0_9] : memref<1x1x384xbf16, #tpu.memory_space<vmem>>, vector<1x1x384xbf16>
    %11 = vector.shape_cast %10 : vector<1x1x384xbf16> to vector<1x384xbf16>
    %12 = arith.extf %11 : vector<1x384xbf16> to vector<1x384xf32>
    %c0_10 = arith.constant 0 : index
    %c0_11 = arith.constant 0 : index
    %c0_12 = arith.constant 0 : index
    %13 = vector.load %arg6[%c0_10, %c0_11, %c0_12] : memref<1x8x384xbf16, #tpu.memory_space<vmem>>, vector<1x8x384xbf16>
    %14 = vector.shape_cast %13 : vector<1x8x384xbf16> to vector<8x384xbf16>
    %15 = arith.extf %14 : vector<8x384xbf16> to vector<8x384xf32>
    %cst_13 = arith.constant 0.000000e+00 : f32
    %16 = vector.broadcast %cst_13 : f32 to vector<1x384xf32>
    %17 = arith.cmpf ogt, %12, %16 : vector<1x384xf32>
    %cst_14 = arith.constant -8.000000e+01 : f32
    %cst_15 = arith.constant 8.000000e+01 : f32
    %18 = vector.broadcast %cst_14 : f32 to vector<8x384xf32>
    %19 = arith.maximumf %18, %9 : vector<8x384xf32>
    %20 = vector.broadcast %cst_15 : f32 to vector<8x384xf32>
    %21 = arith.minimumf %20, %19 : vector<8x384xf32>
    %cst_16 = arith.constant 0.000000e+00 : f32
    %22 = vector.shape_cast %17 : vector<1x384xi1> to vector<1x384xi1>
    %23 = vector.broadcast %22 : vector<1x384xi1> to vector<8x384xi1>
    %24 = vector.broadcast %cst_16 : f32 to vector<8x384xf32>
    %25 = arith.select %23, %21, %24 : vector<8x384xi1>, vector<8x384xf32>
    %26 = math.exp %25 : vector<8x384xf32>
    %27 = tpu.reciprocal %26 {approx = true} : vector<8x384xf32> -> vector<8x384xf32>
    %28 = vector.broadcast %12 : vector<1x384xf32> to vector<8x384xf32>
    %29 = arith.mulf %15, %28 : vector<8x384xf32>
    %c0_17 = arith.constant 0 : index
    %c0_18 = arith.constant 0 : index
    %30 = vector.load %arg10[%c0_17, %c0_18] : memref<8x384xf32, #tpu.memory_space<vmem>>, vector<8x384xf32>
    %31 = arith.mulf %27, %29 : vector<8x384xf32>
    %32 = arith.addf %30, %31 : vector<8x384xf32>
    %c0_19 = arith.constant 0 : index
    %c0_20 = arith.constant 0 : index
    %33 = vector.load %arg10[%c0_19, %c0_20] : memref<8x384xf32, #tpu.memory_space<vmem>>, vector<8x384xf32>
    tpu.vector_store %arg10[%c0_19, %c0_20], %32 {strides = array<i32>} : memref<8x384xf32, #tpu.memory_space<vmem>>, vector<8x384xf32>,
    %c0_21 = arith.constant 0 : index
    %c0_22 = arith.constant 0 : index
    %34 = vector.load %arg11[%c0_21, %c0_22] : memref<8x384xf32, #tpu.memory_space<vmem>>, vector<8x384xf32>
    %35 = vector.broadcast %12 : vector<1x384xf32> to vector<8x384xf32>
    %36 = arith.subf %35, %29 : vector<8x384xf32>
    %37 = arith.mulf %26, %36 : vector<8x384xf32>
    %38 = arith.addf %34, %37 : vector<8x384xf32>
    %c0_23 = arith.constant 0 : index
    %c0_24 = arith.constant 0 : index
    %39 = vector.load %arg11[%c0_23, %c0_24] : memref<8x384xf32, #tpu.memory_space<vmem>>, vector<8x384xf32>
    tpu.vector_store %arg11[%c0_23, %c0_24], %38 {strides = array<i32>} : memref<8x384xf32, #tpu.memory_space<vmem>>, vector<8x384xf32>,
    %c0_i32_25 = arith.constant 0 : i32
    %40 = arith.cmpi eq, %arg2, %c0_i32_25 : i32
    %41 = arith.extui %40 : i1 to i32
    %c0_i32_26 = arith.constant 0 : i32
    %42 = arith.cmpi ne, %41, %c0_i32_26 : i32
    scf.if %42 {
      %c0_27 = arith.constant 0 : index
      %c0_28 = arith.constant 0 : index
      %43 = vector.load %arg10[%c0_27, %c0_28] : memref<8x384xf32, #tpu.memory_space<vmem>>, vector<8x384xf32>
      %cst_29 = arith.constant dense<0.000000e+00> : vector<8xf32>
      %44 = vector.multi_reduction <add>, %43, %cst_29 [1] : vector<8x384xf32> to vector<8xf32>
      %45 = vector.shape_cast %44 : vector<8xf32> to vector<8x1xf32>
      %c0_30 = arith.constant 0 : index
      %c0_31 = arith.constant 0 : index
      %c0_32 = arith.constant 0 : index
      %c0_33 = arith.constant 0 : index
      %46 = vector.load %arg8[%c0_30, %c0_31, %c0_32, %c0_33] : memref<1x1x8x1xf32, #tpu.memory_space<vmem>>, vector<1x1x8x1xf32>
      %47 = vector.shape_cast %46 : vector<1x1x8x1xf32> to vector<8x1xf32>
      %48 = vector.shape_cast %45 : vector<8x1xf32> to vector<1x1x8x1xf32>
      tpu.vector_store %arg8[%c0_30, %c0_31, %c0_32, %c0_33], %48 {strides = array<i32>} : memref<1x1x8x1xf32, #tpu.memory_space<vmem>>, vector<1x1x8x1xf32>,
      %c0_34 = arith.constant 0 : index
      %c0_35 = arith.constant 0 : index
      %49 = vector.load %arg11[%c0_34, %c0_35] : memref<8x384xf32, #tpu.memory_space<vmem>>, vector<8x384xf32>
      %cst_36 = arith.constant dense<0.000000e+00> : vector<8xf32>
      %50 = vector.multi_reduction <add>, %49, %cst_36 [1] : vector<8x384xf32> to vector<8xf32>
      %51 = vector.shape_cast %50 : vector<8xf32> to vector<8x1xf32>
      %c0_37 = arith.constant 0 : index
      %c0_38 = arith.constant 0 : index
      %c0_39 = arith.constant 0 : index
      %c0_40 = arith.constant 0 : index
      %52 = vector.load %arg9[%c0_37, %c0_38, %c0_39, %c0_40] : memref<1x1x8x1xf32, #tpu.memory_space<vmem>>, vector<1x1x8x1xf32>
      %53 = vector.shape_cast %52 : vector<1x1x8x1xf32> to vector<8x1xf32>
      %54 = vector.shape_cast %51 : vector<8x1xf32> to vector<1x1x8x1xf32>
      tpu.vector_store %arg9[%c0_37, %c0_38, %c0_39, %c0_40], %54 {strides = array<i32>} : memref<1x1x8x1xf32, #tpu.memory_space<vmem>>, vector<1x1x8x1xf32>,
    } else {
    }
    return
  }
  func.func @transform_0(%arg0: i32, %arg1: i32, %arg2: i32) -> (i32, i32, i32) {
    %c1_i32 = arith.constant 1 : i32
    %0 = arith.muli %arg1, %c1_i32 : i32
    %1 = arith.addi %0, %arg2 : i32
    %c0_i32 = arith.constant 0 : i32
    %2 = arith.minsi %1, %c0_i32 : i32
    %c0_i32_0 = arith.constant 0 : i32
    %c0_i32_1 = arith.constant 0 : i32
    return %arg0, %2, %c0_i32_0 : i32, i32, i32
  }
  func.func @transform_1(%arg0: i32, %arg1: i32, %arg2: i32) -> (i32, i32) {
    %c0_i32 = arith.constant 0 : i32
    %c0_i32_0 = arith.constant 0 : i32
    %c0_i32_1 = arith.constant 0 : i32
    return %c0_i32, %c0_i32_0 : i32, i32
  }
  func.func @transform_2(%arg0: i32, %arg1: i32, %arg2: i32) -> (i32, i32) {
    %c0_i32 = arith.constant 0 : i32
    %c0_i32_0 = arith.constant 0 : i32
    %c0_i32_1 = arith.constant 0 : i32
    return %c0_i32, %c0_i32_0 : i32, i32
  }
  func.func @transform_3(%arg0: i32, %arg1: i32, %arg2: i32) -> (i32, i32, i32) {
    %c1_i32 = arith.constant 1 : i32
    %0 = arith.muli %arg1, %c1_i32 : i32
    %1 = arith.addi %0, %arg2 : i32
    %c0_i32 = arith.constant 0 : i32
    %c0_i32_0 = arith.constant 0 : i32
    return %arg0, %c0_i32, %1 : i32, i32, i32
  }
  func.func @transform_4(%arg0: i32, %arg1: i32, %arg2: i32) -> (i32, i32, i32) {
    %c1_i32 = arith.constant 1 : i32
    %0 = arith.muli %arg1, %c1_i32 : i32
    %1 = arith.addi %0, %arg2 : i32
    %c0_i32 = arith.constant 0 : i32
    %c0_i32_0 = arith.constant 0 : i32
    return %arg0, %c0_i32, %1 : i32, i32, i32
  }
  func.func @transform_5(%arg0: i32, %arg1: i32, %arg2: i32) -> (i32, i32, i32, i32) {
    %c0_i32 = arith.constant 0 : i32
    %c0_i32_0 = arith.constant 0 : i32
    %c0_i32_1 = arith.constant 0 : i32
    return %arg0, %arg1, %c0_i32, %c0_i32_0 : i32, i32, i32, i32
  }
  func.func @transform_6(%arg0: i32, %arg1: i32, %arg2: i32) -> (i32, i32, i32, i32) {
    %c0_i32 = arith.constant 0 : i32
    %c0_i32_0 = arith.constant 0 : i32
    %c0_i32_1 = arith.constant 0 : i32
    return %arg0, %arg1, %c0_i32, %c0_i32_0 : i32, i32, i32, i32
  }
}

</mosaic_0001>

<llo_original>
// kernel: tpu_custom_call.1
$region0: #{tpu_custom_call.1}
  #allocation0 [shape = 'u32[]', space=smem, size = 0x4, offset = 0x4, fixed_abs, tag = 'smem constant byte address 0x4 - core index']
  #allocation1 [shape = 'u32[144,128]{1,0:T(1,128)}', space=vmem, size = 0x12000, scoped, tag = 'internal scratch']
  #allocation2 [shape = 'f32[8,384]{1,0:T(8,128)}', space=vmem, size = 0x3000, scoped, tag = 'scratch operand']
  #allocation3 [shape = 'f32[8,384]{1,0:T(8,128)}', space=vmem, size = 0x3000, scoped, tag = 'scratch operand']
  %s0 = inlined_call_operand.vmem [shape: bf16[2,300,128], index: 0, kind: input, shape index: {}]
  %s1 = inlined_call_operand.vmem [shape: bf16[8,128], index: 1, kind: input, shape index: {}]
  %s2 = inlined_call_operand.vmem [shape: f32[8,1], index: 2, kind: input, shape index: {}]
  %s3 = inlined_call_operand.vmem [shape: bf16[2,8,384], index: 3, kind: input, shape index: {}]
  %s4 = inlined_call_operand.vmem [shape: bf16[2,1,384], index: 4, kind: input, shape index: {}]
  %s5 = inlined_call_operand.vmem [shape: f32[2,1,8,1], index: 5, kind: output, shape index: {0}]
  %s6 = inlined_call_operand.vmem [shape: f32[2,1,8,1], index: 6, kind: output, shape index: {1}]
  %7 = xla_tuple %s5, %s6
  %s8 = sld [smem:[#allocation0]]
  $region69: #{tpu_custom_call.1} parent=0
    _
  %s10 = ssub.s32 1, %s8
  %s11 = scalar_select 0, %s10, %s8
  loop: start=0, step=1, limit=4
  $region2: #{tpu_custom_call.1} parent=0 // loop_pre_header
    _
  $region3: #{tpu_custom_call.1} parent=0 // loop_header
    %s13 = sphi 0, %s17
    %p14 = scmp.ge.s32.totalorder %s13, 4
    %s20 = sphi 0, %s39
    %s21 = sphi 0, %s35
    %s22 = sphi 0, %s31
    %s23 = sphi 0, %s20
    %s24 = sphi 0, %s21
    %s25 = sphi 0, %s22
    %s26 = sphi 0, %s23
    %s27 = sphi 0, %s24
    %s28 = sphi 0, %s25
    %s50 = sphi 0, %s52
    %s53 = sphi 0, %s50
    %s54 = sphi 0, %s53
    %s70 = sphi 0, %s54
    %s74 = sphi 0, %s74
    %s76 = sphi 0, %s74
    %s77 = sphi 0, %s76
    %s91 = sphi 0, %s77
    %s95 = sphi 0, %s95
    %s97 = sphi 0, %s95
    %s98 = sphi 0, %s97
    %s112 = sphi 0, %s98
    %s122 = sphi 0, %s124
    %s125 = sphi 0, %s122
    %s126 = sphi 0, %s125
    %s142 = sphi 0, %s126
    %s152 = sphi 0, %s154
    %s155 = sphi 0, %s152
    %s156 = sphi 0, %s155
    %s172 = sphi 0, %s156
    %s180 = sphi 0, %s182
    %s183 = sphi 0, %s180
    %s184 = sphi 0, %s183
    %s200 = sphi 0, %s184
    %s208 = sphi 0, %s210
    %s211 = sphi 0, %s208
    %s212 = sphi 0, %s211
    %s228 = sphi 0, %s212
  $region4: #{tpu_custom_call.1} parent=0 // loop_header_branch
    %16 = sbr.rel (%p14) target = $region8
  $region5: #{tpu_custom_call.1} parent=0 // loop_body
    %s18 = ssub.s32 %s13, 1
    %s19 = ssub.s32 %s13, 2
    %s29 = sadd.s32 1, %s22
    %p30 = scmp.ge.s32.totalorder %s29, 1
    %s31 = scalar_select %p30, 0, %s29
    %s32 = sadd.s32 1, %s21
    %s33 = scalar_select %p30, %s32, %s21
    %p34 = scmp.ge.s32.totalorder %s33, 1
    %s35 = scalar_select %p34, 0, %s33
    %s36 = sadd.s32 1, %s20
    %s37 = scalar_select %p34, %s36, %s20
    %p38 = scmp.ge.s32.totalorder %s37, 2
    %s39 = scalar_select %p38, 0, %s37
    %s40 = sadd.s32 %s21, %s22
    %p41 = scmp.lt.s32.totalorder %s40, 0
    %s42 = scalar_select %p41, %s40, 0
    %s43 = sadd.s32 %s35, %s31
    %p44 = scmp.lt.s32.totalorder %s43, 0
    %s45 = scalar_select %p44, %s43, 0
    %s46 = ssub.s32 %s20, %s39
    %s47 = ssub.s32 %s42, %s45
    %s48 = sor.u32 %s46, %s47
    %p49 = scmp.eq.s32.totalorder %s48, 0
    %s51 = sadd.s32 %s50, 1
    %s52 = scalar_select %p49, %s50, %s51
    %p55 = pneg %p49
    %p56 = scmp.eq.s32.totalorder %s13, 1
    %p57 = por %p55, %p56
    %p58 = scmp.ne.s32.totalorder %s50, %s53
    %p59 = scmp.eq.s32.totalorder %s13, 0
    %p60 = por %p58, %p59
    %p61 = scmp.ne.s32.totalorder %s50, %s53
    %p62 = scmp.eq.s32.totalorder %s18, 1
    %p63 = por %p61, %p62
    %p64 = scmp.ne.s32.totalorder %s53, %s54
    %p65 = scmp.eq.s32.totalorder %s18, 0
    %p66 = por %p64, %p65
    %p67 = scmp.ne.s32.totalorder %s53, %s54
    %p68 = scmp.eq.s32.totalorder %s19, 1
    %p69 = por %p67, %p68
    %p71 = scmp.ne.s32.totalorder %s54, %s70
    %p72 = scmp.eq.s32.totalorder %s19, 0
    %p73 = por %p71, %p72
    %s75 = sadd.s32 %s74, 1
    %p78 = scmp.eq.s32.totalorder %s13, 1
    %p79 = scmp.ne.s32.totalorder %s74, %s76
    %p80 = scmp.eq.s32.totalorder %s13, 0
    %p81 = por %p79, %p80
    %p82 = scmp.ne.s32.totalorder %s74, %s76
    %p83 = scmp.eq.s32.totalorder %s18, 1
    %p84 = por %p82, %p83
    %p85 = scmp.ne.s32.totalorder %s76, %s77
    %p86 = scmp.eq.s32.totalorder %s18, 0
    %p87 = por %p85, %p86
    %p88 = scmp.ne.s32.totalorder %s76, %s77
    %p89 = scmp.eq.s32.totalorder %s19, 1
    %p90 = por %p88, %p89
    %p92 = scmp.ne.s32.totalorder %s77, %s91
    %p93 = scmp.eq.s32.totalorder %s19, 0
    %p94 = por %p92, %p93
    %s96 = sadd.s32 %s95, 1
    %p99 = scmp.eq.s32.totalorder %s13, 1
    %p100 = scmp.ne.s32.totalorder %s95, %s97
    %p101 = scmp.eq.s32.totalorder %s13, 0
    %p102 = por %p100, %p101
    %p103 = scmp.ne.s32.totalorder %s95, %s97
    %p104 = scmp.eq.s32.totalorder %s18, 1
    %p105 = por %p103, %p104
    %p106 = scmp.ne.s32.totalorder %s97, %s98
    %p107 = scmp.eq.s32.totalorder %s18, 0
    %p108 = por %p106, %p107
    %p109 = scmp.ne.s32.totalorder %s97, %s98
    %p110 = scmp.eq.s32.totalorder %s19, 1
    %p111 = por %p109, %p110
    %p113 = scmp.ne.s32.totalorder %s98, %s112
    %p114 = scmp.eq.s32.totalorder %s19, 0
    %p115 = por %p113, %p114
    %s116 = sadd.s32 %s21, %s22
    %s117 = sadd.s32 %s35, %s31
    %s118 = ssub.s32 %s20, %s39
    %s119 = ssub.s32 %s116, %s117
    %s120 = sor.u32 %s118, %s119
    %p121 = scmp.eq.s32.totalorder %s120, 0
    %s123 = sadd.s32 %s122, 1
    %s124 = scalar_select %p121, %s122, %s123
    %p127 = pneg %p121
    %p128 = scmp.eq.s32.totalorder %s13, 1
    %p129 = por %p127, %p128
    %p130 = scmp.ne.s32.totalorder %s122, %s125
    %p131 = scmp.eq.s32.totalorder %s13, 0
    %p132 = por %p130, %p131
    %p133 = scmp.ne.s32.totalorder %s122, %s125
    %p134 = scmp.eq.s32.totalorder %s18, 1
    %p135 = por %p133, %p134
    %p136 = scmp.ne.s32.totalorder %s125, %s126
    %p137 = scmp.eq.s32.totalorder %s18, 0
    %p138 = por %p136, %p137
    %p139 = scmp.ne.s32.totalorder %s125, %s126
    %p140 = scmp.eq.s32.totalorder %s19, 1
    %p141 = por %p139, %p140
    %p143 = scmp.ne.s32.totalorder %s126, %s142
    %p144 = scmp.eq.s32.totalorder %s19, 0
    %p145 = por %p143, %p144
    %s146 = sadd.s32 %s21, %s22
    %s147 = sadd.s32 %s35, %s31
    %s148 = ssub.s32 %s20, %s39
    %s149 = ssub.s32 %s146, %s147
    %s150 = sor.u32 %s148, %s149
    %p151 = scmp.eq.s32.totalorder %s150, 0
    %s153 = sadd.s32 %s152, 1
    %s154 = scalar_select %p151, %s152, %s153
    %p157 = pneg %p151
    %p158 = scmp.eq.s32.totalorder %s13, 1
    %p159 = por %p157, %p158
    %p160 = scmp.ne.s32.totalorder %s152, %s155
    %p161 = scmp.eq.s32.totalorder %s13, 0
    %p162 = por %p160, %p161
    %p163 = scmp.ne.s32.totalorder %s152, %s155
    %p164 = scmp.eq.s32.totalorder %s18, 1
    %p165 = por %p163, %p164
    %p166 = scmp.ne.s32.totalorder %s155, %s156
    %p167 = scmp.eq.s32.totalorder %s18, 0
    %p168 = por %p166, %p167
    %p169 = scmp.ne.s32.totalorder %s155, %s156
    %p170 = scmp.eq.s32.totalorder %s19, 1
    %p171 = por %p169, %p170
    %p173 = scmp.ne.s32.totalorder %s156, %s172
    %p174 = scmp.eq.s32.totalorder %s19, 0
    %p175 = por %p173, %p174
    %s176 = ssub.s32 %s20, %s39
    %s177 = ssub.s32 %s21, %s35
    %s178 = sor.u32 %s176, %s177
    %p179 = scmp.eq.s32.totalorder %s178, 0
    %s181 = sadd.s32 %s180, 1
    %s182 = scalar_select %p179, %s180, %s181
    %p185 = pneg %p179
    %p186 = scmp.eq.s32.totalorder %s13, 1
    %p187 = por %p185, %p186
    %p188 = scmp.ne.s32.totalorder %s180, %s183
    %p189 = scmp.eq.s32.totalorder %s13, 0
    %p190 = por %p188, %p189
    %p191 = scmp.ne.s32.totalorder %s180, %s183
    %p192 = scmp.eq.s32.totalorder %s18, 1
    %p193 = por %p191, %p192
    %p194 = scmp.ne.s32.totalorder %s183, %s184
    %p195 = scmp.eq.s32.totalorder %s18, 0
    %p196 = por %p194, %p195
    %p197 = scmp.ne.s32.totalorder %s183, %s184
    %p198 = scmp.eq.s32.totalorder %s19, 1
    %p199 = por %p197, %p198
    %p201 = scmp.ne.s32.totalorder %s184, %s200
    %p202 = scmp.eq.s32.totalorder %s19, 0
    %p203 = por %p201, %p202
    %s204 = ssub.s32 %s20, %s39
    %s205 = ssub.s32 %s21, %s35
    %s206 = sor.u32 %s204, %s205
    %p207 = scmp.eq.s32.totalorder %s206, 0
    %s209 = sadd.s32 %s208, 1
    %s210 = scalar_select %p207, %s208, %s209
    %p213 = pneg %p207
    %p214 = scmp.eq.s32.totalorder %s13, 1
    %p215 = por %p213, %p214
    %p216 = scmp.ne.s32.totalorder %s208, %s211
    %p217 = scmp.eq.s32.totalorder %s13, 0
    %p218 = por %p216, %p217
    %p219 = scmp.ne.s32.totalorder %s208, %s211
    %p220 = scmp.eq.s32.totalorder %s18, 1
    %p221 = por %p219, %p220
    %p222 = scmp.ne.s32.totalorder %s211, %s212
    %p223 = scmp.eq.s32.totalorder %s18, 0
    %p224 = por %p222, %p223
    %p225 = scmp.ne.s32.totalorder %s211, %s212
    %p226 = scmp.eq.s32.totalorder %s19, 1
    %p227 = por %p225, %p226
    %p229 = scmp.ne.s32.totalorder %s212, %s228
    %p230 = scmp.eq.s32.totalorder %s19, 0
    %p231 = por %p229, %p230
    %p232 = scmp.le.s32.totalorder 1, %s13
    %p233 = scmp.lt.s32.totalorder %s13, 3
    %p234 = pnand %p232, %p233
    %p235 = pneg %p234
    // Predicated region
    $region9: #{tpu_custom_call.1} parent=5 // pred_check
      _
    $region10: #{tpu_custom_call.1} parent=5 // pred_check_branch
      %237 = sbr.rel (%p234) target = $region12
    $region11: #{tpu_custom_call.1} parent=5 // pred_region
      %s238 = ssub.s32 %s13, 1
      // Predicated region
      $region13: #{tpu_custom_call.1} parent=11 // pred_check
        %p239 = pneg %p87
      $region14: #{tpu_custom_call.1} parent=11 // pred_check_branch
        %241 = sbr.rel (%p239) target = $region16
      $region15: #{tpu_custom_call.1} parent=11 // pred_region
        _
      $region16: #{tpu_custom_call.1} parent=11 // pred_fallthru
        _
      // Predicated region
      $region17: #{tpu_custom_call.1} parent=11 // pred_check
        %p242 = pneg %p108
      $region18: #{tpu_custom_call.1} parent=11 // pred_check_branch
        %244 = sbr.rel (%p242) target = $region20
      $region19: #{tpu_custom_call.1} parent=11 // pred_region
        _
      $region20: #{tpu_custom_call.1} parent=11 // pred_fallthru
        _
    $region12: #{tpu_custom_call.1} parent=5 // pred_fallthru
      _
    %p245 = scmp.lt.s32.totalorder %s13, 2
    // Predicated region
    $region21: #{tpu_custom_call.1} parent=5 // pred_check
      %p246 = pneg %p245
    $region22: #{tpu_custom_call.1} parent=5 // pred_check_branch
      %248 = sbr.rel (%p246) target = $region24
    $region23: #{tpu_custom_call.1} parent=5 // pred_region
      // Predicated region
      $region25: #{tpu_custom_call.1} parent=23 // pred_check
        %p249 = pneg %p60
      $region26: #{tpu_custom_call.1} parent=23 // pred_check_branch
        %251 = sbr.rel (%p249) target = $region28
      $region27: #{tpu_custom_call.1} parent=23 // pred_region
        %s252 = sadd.s32 %s21, %s22
        %p253 = scmp.lt.s32.totalorder %s252, 0
        %s254 = scalar_select %p253, %s252, 0
        %s255 = smul.u32 48, %s254
        %s256 = ssub.s32 38, %s255
        %s257 = smul.u32 64, %s256
        %p258 = scmp.lt.s32.totalorder %s20, 1
        %s259 = scalar_select %p258, %s20, 1
        %p260 = scmp.lt.s32.totalorder %s255, 37
        %s261 = scalar_select %p260, %s255, 37
        %s262 = smul.addr %s259, 38
        %s263 = sadd.s32 %s261, %s262
        %s264 = smul.addr %s263, 4
        %s265 = scalar_lea.vmem %s0, %s264
        %s266 = sadd.s32 %s21, %s22
        %p267 = scmp.lt.s32.totalorder %s266, 0
        %s268 = scalar_select %p267, %s266, 0
        %s269 = smul.u32 48, %s268
        %s270 = ssub.s32 38, %s269
        %s271 = smul.u32 64, %s270
      $region28: #{tpu_custom_call.1} parent=23 // pred_fallthru
        _
      // Predicated region
      $region29: #{tpu_custom_call.1} parent=23 // pred_check
        %p272 = pneg %p132
      $region30: #{tpu_custom_call.1} parent=23 // pred_check_branch
        %274 = sbr.rel (%p272) target = $region32
      $region31: #{tpu_custom_call.1} parent=23 // pred_region
        %s275 = sadd.s32 %s21, %s22
        %s276 = smul.u32 3, %s275
        %p277 = scmp.lt.s32.totalorder %s20, 1
        %s278 = scalar_select %p277, %s20, 1
        %p279 = scmp.lt.s32.totalorder %s276, 2
        %s280 = scalar_select %p279, %s276, 2
        %s281 = smul.addr %s278, 3
        %s282 = sadd.s32 %s280, %s281
        %s283 = smul.addr %s282, 4
        %s284 = scalar_lea.vmem %s3, %s283
        %s285 = sadd.s32 %s21, %s22
        %s286 = smul.u32 3, %s285
      $region32: #{tpu_custom_call.1} parent=23 // pred_fallthru
        _
      // Predicated region
      $region33: #{tpu_custom_call.1} parent=23 // pred_check
        %p287 = pneg %p162
      $region34: #{tpu_custom_call.1} parent=23 // pred_check_branch
        %289 = sbr.rel (%p287) target = $region36
      $region35: #{tpu_custom_call.1} parent=23 // pred_region
        %s290 = sadd.s32 %s21, %s22
        %s291 = smul.u32 3, %s290
        %p292 = scmp.lt.s32.totalorder %s20, 1
        %s293 = scalar_select %p292, %s20, 1
        %p294 = scmp.lt.s32.totalorder %s291, 2
        %s295 = scalar_select %p294, %s291, 2
        %s296 = smul.addr %s293, 3
        %s297 = sadd.s32 %s295, %s296
        %s298 = scalar_lea.vmem %s4, %s297
        %s299 = sadd.s32 %s21, %s22
        %s300 = smul.u32 3, %s299
      $region36: #{tpu_custom_call.1} parent=23 // pred_fallthru
        _
    $region24: #{tpu_custom_call.1} parent=5 // pred_fallthru
      _
    %p301 = scmp.le.s32.totalorder 1, %s13
    %p302 = scmp.lt.s32.totalorder %s13, 3
    %p303 = pnand %p301, %p302
    %p304 = pneg %p303
    // Predicated region
    $region37: #{tpu_custom_call.1} parent=5 // pred_check
      _
    $region38: #{tpu_custom_call.1} parent=5 // pred_check_branch
      %306 = sbr.rel (%p303) target = $region40
    $region39: #{tpu_custom_call.1} parent=5 // pred_region
      %s307 = ssub.s32 %s13, 1
      %s308 = sadd.s32 %s24, %s25
      %p309 = scmp.lt.s32.totalorder %s308, 0
      %s310 = scalar_select %p309, %s308, 0
      %s311 = smul.u32 48, %s310
      %s312 = ssub.s32 38, %s311
      %s313 = smul.u32 64, %s312
      %p314 = scmp.lt.s32.totalorder %s23, 1
      %s315 = scalar_select %p314, %s23, 1
      %p316 = scmp.lt.s32.totalorder %s311, 37
      %s317 = scalar_select %p316, %s311, 37
      %s318 = smul.addr %s315, 38
      %s319 = sadd.s32 %s317, %s318
      %s320 = smul.addr %s319, 4
      %s321 = scalar_lea.vmem %s0, %s320
      %p322 = pneg %p66
      %p323 = pneg %p63
      %p324 = pneg %p87
      %p325 = pneg %p84
      %p326 = pneg %p108
      %p327 = pneg %p105
      %s328 = sadd.s32 %s24, %s25
      %s329 = smul.u32 3, %s328
      %p330 = scmp.lt.s32.totalorder %s23, 1
      %s331 = scalar_select %p330, %s23, 1
      %p332 = scmp.lt.s32.totalorder %s329, 2
      %s333 = scalar_select %p332, %s329, 2
      %s334 = smul.addr %s331, 3
      %s335 = sadd.s32 %s333, %s334
      %s336 = smul.addr %s335, 4
      %s337 = scalar_lea.vmem %s3, %s336
      %p338 = pneg %p138
      %p339 = pneg %p135
      %s340 = sadd.s32 %s24, %s25
      %s341 = smul.u32 3, %s340
      %p342 = scmp.lt.s32.totalorder %s23, 1
      %s343 = scalar_select %p342, %s23, 1
      %p344 = scmp.lt.s32.totalorder %s341, 2
      %s345 = scalar_select %p344, %s341, 2
      %s346 = smul.addr %s343, 3
      %s347 = sadd.s32 %s345, %s346
      %s348 = scalar_lea.vmem %s4, %s347
      %p349 = pneg %p168
      %p350 = pneg %p165
      %p351 = pneg %p196
      %p352 = pneg %p193
      %p353 = scmp.lt.s32.totalorder %s23, 1
      %s354 = scalar_select %p353, %s23, 1
      %p355 = scmp.lt.s32.totalorder %s24, 0
      %s356 = scalar_select %p355, %s24, 0
      %s357 = sadd.s32 %s356, %s354
      %s358 = smul.addr %s357, 8
      %s359 = scalar_lea.vmem %s5, %s358
      %p360 = pneg %p224
      %p361 = pneg %p221
      %p362 = scmp.lt.s32.totalorder %s23, 1
      %s363 = scalar_select %p362, %s23, 1
      %p364 = scmp.lt.s32.totalorder %s24, 0
      %s365 = scalar_select %p364, %s24, 0
      %s366 = sadd.s32 %s365, %s363
      %s367 = smul.addr %s366, 8
      %s368 = scalar_lea.vmem %s6, %s367
      %s369 = sadd.s32 %s24, %s25
      %p370 = scmp.lt.s32.totalorder %s369, 0
      %s371 = scalar_select %p370, %s369, 0
      %s372 = smul.u32 48, %s371
      %s373 = ssub.s32 38, %s372
      %s374 = smul.u32 64, %s373
      %p375 = scmp.lt.s32.totalorder %s23, 1
      %s376 = scalar_select %p375, %s23, 1
      %p377 = scmp.lt.s32.totalorder %s372, 37
      %s378 = scalar_select %p377, %s372, 37
      %s379 = smul.addr %s376, 38
      %s380 = sadd.s32 %s378, %s379
      %s381 = smul.addr %s380, 4
      %s382 = scalar_lea.vmem %s0, %s381
      %s383 = sadd.s32 %s24, %s25
      %p384 = scmp.lt.s32.totalorder %s383, 0
      %s385 = scalar_select %p384, %s383, 0
      %s386 = smul.u32 48, %s385
      %s387 = ssub.s32 38, %s386
      %s388 = smul.u32 64, %s387
      %s389 = sadd.s32 %s24, %s25
      %s390 = smul.u32 3, %s389
      %p391 = scmp.lt.s32.totalorder %s23, 1
      %s392 = scalar_select %p391, %s23, 1
      %p393 = scmp.lt.s32.totalorder %s390, 2
      %s394 = scalar_select %p393, %s390, 2
      %s395 = smul.addr %s392, 3
      %s396 = sadd.s32 %s394, %s395
      %s397 = smul.addr %s396, 4
      %s398 = scalar_lea.vmem %s3, %s397
      %s399 = sadd.s32 %s24, %s25
      %s400 = smul.u32 3, %s399
      %s401 = sadd.s32 %s24, %s25
      %s402 = smul.u32 3, %s401
      %p403 = scmp.lt.s32.totalorder %s23, 1
      %s404 = scalar_select %p403, %s23, 1
      %p405 = scmp.lt.s32.totalorder %s402, 2
      %s406 = scalar_select %p405, %s402, 2
      %s407 = smul.addr %s404, 3
      %s408 = sadd.s32 %s406, %s407
      %s409 = scalar_lea.vmem %s4, %s408
      %s410 = sadd.s32 %s24, %s25
      %s411 = smul.u32 3, %s410
      %p412 = scmp.lt.s32.totalorder %s23, 1
      %s413 = scalar_select %p412, %s23, 1
      %p414 = scmp.lt.s32.totalorder %s24, 0
      %s415 = scalar_select %p414, %s24, 0
      %s416 = sadd.s32 %s415, %s413
      %s417 = smul.addr %s416, 8
      %s418 = scalar_lea.vmem %s5, %s417
      %p419 = scmp.lt.s32.totalorder %s23, 1
      %s420 = scalar_select %p419, %s23, 1
      %p421 = scmp.lt.s32.totalorder %s24, 0
      %s422 = scalar_select %p421, %s24, 0
      %s423 = sadd.s32 %s422, %s420
      %s424 = smul.addr %s423, 8
      %s425 = scalar_lea.vmem %s6, %s424
      %p427 = scmp.eq.s32.totalorder %s25, 0
      // Predicated region
      $region41: #{tpu_custom_call.1} parent=39 // pred_check
        %p428 = pneg %p427
      $region42: #{tpu_custom_call.1} parent=39 // pred_check_branch
        %430 = sbr.rel (%p428) target = $region44
      $region43: #{tpu_custom_call.1} parent=39 // pred_region
        %431 = vst [vmem:[#allocation2] sm:$0xff] 0.0
        %432 = vst [vmem:[#allocation2 + $0x8] sm:$0xff] 0.0
        %433 = vst [vmem:[#allocation2 + $0x10] sm:$0xff] 0.0
        %434 = vst [vmem:[#allocation3] sm:$0xff] 0.0
        %435 = vst [vmem:[#allocation3 + $0x8] sm:$0xff] 0.0
        %436 = vst [vmem:[#allocation3 + $0x10] sm:$0xff] 0.0
      $region44: #{tpu_custom_call.1} parent=39 // pred_fallthru
        _
      %v437 = vld [vmem:[%s1] sm:$0xf]
      %v438 = vld [vmem:[%s382] sm:$0xf]
      %v439 = vld [vmem:[%s382 + $0x4] sm:$0xf]
      %v440 = vld [vmem:[%s382 + $0x8] sm:$0xf]
      %v441 = vld [vmem:[%s382 + $0xc] sm:$0xf]
      %v442 = vld [vmem:[%s382 + $0x10] sm:$0xf]
      %v443 = vld [vmem:[%s382 + $0x14] sm:$0xf]
      %v444 = vld [vmem:[%s382 + $0x18] sm:$0xf]
      %v445 = vld [vmem:[%s382 + $0x1c] sm:$0xf]
      %v446 = vld [vmem:[%s382 + $0x20] sm:$0xf]
      %v447 = vld [vmem:[%s382 + $0x24] sm:$0xf]
      %v448 = vld [vmem:[%s382 + $0x28] sm:$0xf]
      %v449 = vld [vmem:[%s382 + $0x2c] sm:$0xf]
      %v450 = vld [vmem:[%s382 + $0x30] sm:$0xf]
      %v451 = vld [vmem:[%s382 + $0x34] sm:$0xf]
      %v452 = vld [vmem:[%s382 + $0x38] sm:$0xf]
      %v453 = vld [vmem:[%s382 + $0x3c] sm:$0xf]
      %v454 = vld [vmem:[%s382 + $0x40] sm:$0xf]
      %v455 = vld [vmem:[%s382 + $0x44] sm:$0xf]
      %v456 = vld [vmem:[%s382 + $0x48] sm:$0xf]
      %v457 = vld [vmem:[%s382 + $0x4c] sm:$0xf]
      %v458 = vld [vmem:[%s382 + $0x50] sm:$0xf]
      %v459 = vld [vmem:[%s382 + $0x54] sm:$0xf]
      %v460 = vld [vmem:[%s382 + $0x58] sm:$0xf]
      %v461 = vld [vmem:[%s382 + $0x5c] sm:$0xf]
      %v462 = vld [vmem:[%s382 + $0x60] sm:$0xf]
      %v463 = vld [vmem:[%s382 + $0x64] sm:$0xf]
      %v464 = vld [vmem:[%s382 + $0x68] sm:$0xf]
      %v465 = vld [vmem:[%s382 + $0x6c] sm:$0xf]
      %v466 = vld [vmem:[%s382 + $0x70] sm:$0xf]
      %v467 = vld [vmem:[%s382 + $0x74] sm:$0xf]
      %v468 = vld [vmem:[%s382 + $0x78] sm:$0xf]
      %v469 = vld [vmem:[%s382 + $0x7c] sm:$0xf]
      %v470 = vld [vmem:[%s382 + $0x80] sm:$0xf]
      %v471 = vld [vmem:[%s382 + $0x84] sm:$0xf]
      %v472 = vld [vmem:[%s382 + $0x88] sm:$0xf]
      %v473 = vld [vmem:[%s382 + $0x8c] sm:$0xf]
      %v474 = vld [vmem:[%s382 + $0x90] sm:$0xf]
      %v475 = vld [vmem:[%s382 + $0x94] sm:$0xf]
      %v476 = vld [vmem:[%s382 + $0x98] sm:$0xf]
      %v477 = vld [vmem:[%s382 + $0x9c] sm:$0xf]
      %v478 = vld [vmem:[%s382 + $0xa0] sm:$0xf]
      %v479 = vld [vmem:[%s382 + $0xa4] sm:$0xf]
      %v480 = vld [vmem:[%s382 + $0xa8] sm:$0xf]
      %v481 = vld [vmem:[%s382 + $0xac] sm:$0xf]
      %v482 = vld [vmem:[%s382 + $0xb0] sm:$0xf]
      %v483 = vld [vmem:[%s382 + $0xb4] sm:$0xf]
      %v484 = vld [vmem:[%s382 + $0xb8] sm:$0xf]
      %v485 = vld [vmem:[%s382 + $0xbc] sm:$0xf]
      %v486 = vld [vmem:[%s2] sm:$0xff]
      %488 = vset.pattern.permute.xlu0 0
      %489 = vperm.xlu0 %488, %v486
      %v490 = vpop.permute.xlu0 %489
      %v540 = vunpack.c.l.b16 %v438
      %v541 = vunpack.c.l.b16 %v439
      %v542 = vunpack.c.l.b16 %v440
      %v543 = vunpack.c.l.b16 %v441
      %v544 = vunpack.c.l.b16 %v442
      %v545 = vunpack.c.l.b16 %v443
      %v546 = vunpack.c.l.b16 %v444
      %v547 = vunpack.c.l.b16 %v445
      %v548 = vunpack.c.l.b16 %v446
      %v549 = vunpack.c.l.b16 %v447
      %v550 = vunpack.c.l.b16 %v448
      %v551 = vunpack.c.l.b16 %v449
      %v552 = vunpack.c.l.b16 %v450
      %v553 = vunpack.c.l.b16 %v451
      %v554 = vunpack.c.l.b16 %v452
      %v555 = vunpack.c.l.b16 %v453
      %v556 = vunpack.c.l.b16 %v454
      %v557 = vunpack.c.l.b16 %v455
      %v558 = vunpack.c.l.b16 %v456
      %v559 = vunpack.c.l.b16 %v457
      %v560 = vunpack.c.l.b16 %v458
      %v561 = vunpack.c.l.b16 %v459
      %v562 = vunpack.c.l.b16 %v460
      %v563 = vunpack.c.l.b16 %v461
      %v564 = vunpack.c.l.b16 %v462
      %v565 = vunpack.c.l.b16 %v463
      %v566 = vunpack.c.l.b16 %v464
      %v567 = vunpack.c.l.b16 %v465
      %v568 = vunpack.c.l.b16 %v466
      %v569 = vunpack.c.l.b16 %v467
      %v570 = vunpack.c.l.b16 %v468
      %v571 = vunpack.c.l.b16 %v469
      %v572 = vunpack.c.l.b16 %v470
      %v573 = vunpack.c.l.b16 %v471
      %v574 = vunpack.c.l.b16 %v472
      %v575 = vunpack.c.l.b16 %v473
      %v576 = vunpack.c.l.b16 %v474
      %v577 = vunpack.c.l.b16 %v475
      %v578 = vunpack.c.l.b16 %v476
      %v579 = vunpack.c.l.b16 %v477
      %v580 = vunpack.c.l.b16 %v478
      %v581 = vunpack.c.l.b16 %v479
      %v582 = vunpack.c.l.b16 %v480
      %v583 = vunpack.c.l.b16 %v481
      %v584 = vunpack.c.l.b16 %v482
      %v585 = vunpack.c.l.b16 %v483
      %v586 = vunpack.c.l.b16 %v484
      %v587 = vunpack.c.l.b16 %v485
      %v588 = vpack.c.b16 %v541, %v540
      %v589 = vpack.c.b16 %v543, %v542
      %v590 = vpack.c.b16 %v545, %v544
      %v591 = vpack.c.b16 %v547, %v546
      %v592 = vpack.c.b16 %v549, %v548
      %v593 = vpack.c.b16 %v551, %v550
      %v594 = vpack.c.b16 %v553, %v552
      %v595 = vpack.c.b16 %v555, %v554
      %v596 = vpack.c.b16 %v557, %v556
      %v597 = vpack.c.b16 %v559, %v558
      %v598 = vpack.c.b16 %v561, %v560
      %v599 = vpack.c.b16 %v563, %v562
      %v600 = vpack.c.b16 %v565, %v564
      %v601 = vpack.c.b16 %v567, %v566
      %v602 = vpack.c.b16 %v569, %v568
      %v603 = vpack.c.b16 %v571, %v570
      %v604 = vpack.c.b16 %v573, %v572
      %v605 = vpack.c.b16 %v575, %v574
      %v606 = vpack.c.b16 %v577, %v576
      %v607 = vpack.c.b16 %v579, %v578
      %v608 = vpack.c.b16 %v581, %v580
      %v609 = vpack.c.b16 %v583, %v582
      %v610 = vpack.c.b16 %v585, %v584
      %v611 = vpack.c.b16 %v587, %v586
      %636 = vmatprep.subr.bf16.mxu0 0
      %637 = vmatpush1.bf16.xpose.msra.mxu0 %v595
      %638 = vmatprep.subr.bf16.mxu0 0
      %639 = vmatpush1.bf16.xpose.msra.mxu0 %v594
      %640 = vmatprep.subr.bf16.mxu0 0
      %641 = vmatpush1.bf16.xpose.msra.mxu0 %v593
      %642 = vmatprep.subr.bf16.mxu0 0
      %643 = vmatpush1.bf16.xpose.msra.mxu0 %v592
      %644 = vmatprep.subr.bf16.mxu0 0
      %645 = vmatpush1.bf16.xpose.msra.mxu0 %v591
      %646 = vmatprep.subr.bf16.mxu0 0
      %647 = vmatpush1.bf16.xpose.msra.mxu0 %v590
      %648 = vmatprep.subr.bf16.mxu0 0
      %649 = vmatpush1.bf16.xpose.msra.mxu0 %v589
      %650 = vmatprep.subr.bf16.mxu0 0
      %651 = vmatpush1.bf16.xpose.msra.mxu0 %v588
      %652 = vmatprep.subr.bf16.mxu0 0
      %653 = vmatpush2.bf16.xpose.msra.mxu0 %v603
      %654 = vmatprep.subr.bf16.mxu0 0
      %655 = vmatpush2.bf16.xpose.msra.mxu0 %v602
      %656 = vmatprep.subr.bf16.mxu0 0
      %657 = vmatpush2.bf16.xpose.msra.mxu0 %v601
      %658 = vmatprep.subr.bf16.mxu0 0
      %659 = vmatpush2.bf16.xpose.msra.mxu0 %v600
      %660 = vmatprep.subr.bf16.mxu0 0
      %661 = vmatpush2.bf16.xpose.msra.mxu0 %v599
      %662 = vmatprep.subr.bf16.mxu0 0
      %663 = vmatpush2.bf16.xpose.msra.mxu0 %v598
      %664 = vmatprep.subr.bf16.mxu0 0
      %665 = vmatpush2.bf16.xpose.msra.mxu0 %v597
      %666 = vmatprep.subr.bf16.mxu0 0
      %667 = vmatpush2.bf16.xpose.msra.mxu0 %v596
      %668 = vmatprep.mubr.bf16.mxu0 0
      %669 = vmatmul.mubr.bf16.gmra.mxu0 %v437
      %v670 = vpop.f32.mrf.mxu0
      %v671 = vadd.f32 %v490, %v670
      %v672 = vpop.f32.mrf.mxu0
      %v673 = vadd.f32 %v490, %v672
      %v674 = vpop.f32.mrf.mxu0
      %v675 = vpop.f32.mrf.mxu0
      %676 = vdwg.mxu0
      %677 = vmatprep.subr.bf16.mxu0 0
      %678 = vmatpush1.bf16.xpose.msra.mxu0 %v611
      %679 = vmatprep.subr.bf16.mxu0 0
      %680 = vmatpush1.bf16.xpose.msra.mxu0 %v610
      %681 = vmatprep.subr.bf16.mxu0 0
      %682 = vmatpush1.bf16.xpose.msra.mxu0 %v609
      %683 = vmatprep.subr.bf16.mxu0 0
      %684 = vmatpush1.bf16.xpose.msra.mxu0 %v608
      %685 = vmatprep.subr.bf16.mxu0 0
      %686 = vmatpush1.bf16.xpose.msra.mxu0 %v607
      %687 = vmatprep.subr.bf16.mxu0 0
      %688 = vmatpush1.bf16.xpose.msra.mxu0 %v606
      %689 = vmatprep.subr.bf16.mxu0 0
      %690 = vmatpush1.bf16.xpose.msra.mxu0 %v605
      %691 = vmatprep.subr.bf16.mxu0 0
      %692 = vmatpush1.bf16.xpose.msra.mxu0 %v604
      %693 = vmatprep.subr.bf16.mxu0 0
      %694 = vmatpush2.bf16.xpose.msra.mxu0 0
      %695 = vmatprep.subr.bf16.mxu0 0
      %696 = vmatpush2.bf16.xpose.msra.mxu0 0
      %697 = vmatprep.subr.bf16.mxu0 0
      %698 = vmatpush2.bf16.xpose.msra.mxu0 0
      %699 = vmatprep.subr.bf16.mxu0 0
      %700 = vmatpush2.bf16.xpose.msra.mxu0 0
      %701 = vmatprep.subr.bf16.mxu0 0
      %702 = vmatpush2.bf16.xpose.msra.mxu0 0
      %703 = vmatprep.subr.bf16.mxu0 0
      %704 = vmatpush2.bf16.xpose.msra.mxu0 0
      %705 = vmatprep.subr.bf16.mxu0 0
      %706 = vmatpush2.bf16.xpose.msra.mxu0 0
      %707 = vmatprep.subr.bf16.mxu0 0
      %708 = vmatpush2.bf16.xpose.msra.mxu0 0
      %709 = vmatprep.mubr.bf16.mxu0 0
      %710 = vmatmul.mubr.bf16.gmra.mxu0 %v437
      %v711 = vpop.f32.mrf.mxu0
      %v712 = vadd.f32 %v490, %v711
      %v713 = vpop.f32.mrf.mxu0
      %v714 = vpop.f32.mrf.mxu0
      %v715 = vpop.f32.mrf.mxu0
      %716 = vdwg.mxu0
      %v717 = vld [vmem:[%s409] sm:$0x7]
      %v718 = vunpack.c.l.bf16 %v717
      %v719 = vld [vmem:[%s398] sm:$0xff]
      %v720 = vld [vmem:[%s398 + $0x8] sm:$0xf]
      %v721 = vunpack.c.l.bf16 %v719
      %v722 = vunpack.c.h.bf16 %v719
      %v723 = vunpack.c.l.bf16 %v720
      %vm724 = vcmp.gt.f32.partialorder %v718, 0.0
      %v725 = vmax.f32 %v671, -80.0
      %v726 = vmax.f32 %v673, -80.0
      %v727 = vmax.f32 %v712, -80.0
      %v728 = vmin.f32 %v725, 80.0
      %v729 = vmin.f32 %v726, 80.0
      %v730 = vmin.f32 %v727, 80.0
      %v731 = vsel %vm724, 1, 0
      %v732 = vlaneseq
      %v733 = vshrl.u32 %v732, 7
      %v734 = vsub.s32 0, %v733
      %v735 = vrot.slane %v731, %v734
      %v736 = vlaneseq
      %v737 = vshrl.u32 %v736, 7
      %v738 = vsub.s32 2, %v737
      %v739 = vrot.slane %v731, %v738
      %v740 = vlaneseq
      %v741 = vshrl.u32 %v740, 7
      %v742 = vsub.s32 4, %v741
      %v743 = vrot.slane %v731, %v742
      %v744 = vlaneseq
      %v745 = vshrl.u32 %v744, 7
      %v746 = vsub.s32 0, %v745
      %v747 = vrot.slane %v735, %v746
      %v748 = vlaneseq
      %v749 = vshrl.u32 %v748, 7
      %v750 = vsub.s32 0, %v749
      %v751 = vrot.slane %v739, %v750
      %v752 = vlaneseq
      %v753 = vshrl.u32 %v752, 7
      %v754 = vsub.s32 0, %v753
      %v755 = vrot.slane %v743, %v754
      %vm756 = vcmp.eq.s32.totalorder %v747, 1
      %vm757 = vcmp.eq.s32.totalorder %v751, 1
      %vm758 = vcmp.eq.s32.totalorder %v755, 1
      %v759 = vsel %vm756, %v728, 0.0
      %v760 = vsel %vm757, %v729, 0.0
      %v761 = vsel %vm758, %v730, 0.0
      %v762 = vmul.f32 %v759, 1.442695
      %v763 = vpow.pop %v762
      %v764 = vmul.f32 %v760, 1.442695
      %v765 = vpow.pop %v764
      %v766 = vmul.f32 %v761, 1.442695
      %v767 = vpow.pop %v766
      %v768 = vrcp.pop %v763
      %v769 = vrcp.pop %v765
      %v770 = vrcp.pop %v767
      %v772 = vlaneseq
      %v773 = vshrl.u32 %v772, 7
      %v774 = vsub.s32 0, %v773
      %v775 = vrot.slane %v718, %v774
      %v776 = vlaneseq
      %v777 = vshrl.u32 %v776, 7
      %v778 = vsub.s32 2, %v777
      %v779 = vrot.slane %v718, %v778
      %v780 = vlaneseq
      %v781 = vshrl.u32 %v780, 7
      %v782 = vsub.s32 4, %v781
      %v783 = vrot.slane %v718, %v782
      %v787 = vlaneseq
      %v788 = vshrl.u32 %v787, 7
      %v789 = vsub.s32 0, %v788
      %v790 = vrot.slane %v775, %v789
      %v791 = vlaneseq
      %v792 = vshrl.u32 %v791, 7
      %v793 = vsub.s32 0, %v792
      %v794 = vrot.slane %v779, %v793
      %v795 = vlaneseq
      %v796 = vshrl.u32 %v795, 7
      %v797 = vsub.s32 0, %v796
      %v798 = vrot.slane %v783, %v797
      %v799 = vmul.f32 %v721, %v790
      %v800 = vmul.f32 %v722, %v794
      %v801 = vmul.f32 %v723, %v798
      %v802 = vld [vmem:[#allocation2] sm:$0xff]
      %v803 = vld [vmem:[#allocation2 + $0x8] sm:$0xff]
      %v804 = vld [vmem:[#allocation2 + $0x10] sm:$0xff]
      %v805 = vmul.f32 %v768, %v799
      %v806 = vmul.f32 %v769, %v800
      %v807 = vmul.f32 %v770, %v801
      %v808 = vadd.f32 %v802, %v805
      %v809 = vadd.f32 %v803, %v806
      %v810 = vadd.f32 %v804, %v807
      %811 = vst [vmem:[#allocation2] sm:$0xff] %v808
      %812 = vst [vmem:[#allocation2 + $0x8] sm:$0xff] %v809
      %813 = vst [vmem:[#allocation2 + $0x10] sm:$0xff] %v810
      %v814 = vld [vmem:[#allocation3] sm:$0xff]
      %v815 = vld [vmem:[#allocation3 + $0x8] sm:$0xff]
      %v816 = vld [vmem:[#allocation3 + $0x10] sm:$0xff]
      %v817 = vsub.f32 %v790, %v799
      %v818 = vsub.f32 %v794, %v800
      %v819 = vsub.f32 %v798, %v801
      %v820 = vmul.f32 %v763, %v817
      %v821 = vmul.f32 %v765, %v818
      %v822 = vmul.f32 %v767, %v819
      %v823 = vadd.f32 %v814, %v820
      %v824 = vadd.f32 %v815, %v821
      %v825 = vadd.f32 %v816, %v822
      %826 = vst [vmem:[#allocation3] sm:$0xff] %v823
      %827 = vst [vmem:[#allocation3 + $0x8] sm:$0xff] %v824
      %828 = vst [vmem:[#allocation3 + $0x10] sm:$0xff] %v825
      // Predicated region
      $region45: #{tpu_custom_call.1} parent=39 // pred_check
        %p829 = pneg %p427
      $region46: #{tpu_custom_call.1} parent=39 // pred_check_branch
        %831 = sbr.rel (%p829) target = $region48
      $region47: #{tpu_custom_call.1} parent=39 // pred_region
        %v832 = vld [vmem:[#allocation2] sm:$0xff]
        %v833 = vld [vmem:[#allocation2 + $0x8] sm:$0xff]
        %v834 = vld [vmem:[#allocation2 + $0x10] sm:$0xff]
        %v835 = vadd.f32 %v832, %v833
        %v836 = vadd.f32 %v835, %v834
        %837 = vadd.xlane.f32.xlu0 %v836
        %v838 = vpop.xlane.xlu0 %837
        %vm839 = vcmask 7168
        %840 = vst.msk [vmem:[%s418] sm:$0xff] %vm839, %v838
        %v841 = vld [vmem:[#allocation3] sm:$0xff]
        %v842 = vld [vmem:[#allocation3 + $0x8] sm:$0xff]
        %v843 = vld [vmem:[#allocation3 + $0x10] sm:$0xff]
        %v844 = vadd.f32 %v841, %v842
        %v845 = vadd.f32 %v844, %v843
        %846 = vadd.xlane.f32.xlu0 %v845
        %v847 = vpop.xlane.xlu0 %846
        %848 = vst.msk [vmem:[%s425] sm:$0xff] %vm839, %v847
      $region48: #{tpu_custom_call.1} parent=39 // pred_fallthru
        _
      %p849 = scmp.lt.s32.totalorder %s23, 1
      %s850 = scalar_select %p849, %s23, 1
      %p851 = scmp.lt.s32.totalorder %s24, 0
      %s852 = scalar_select %p851, %s24, 0
      %s853 = sadd.s32 %s852, %s850
      %s854 = smul.addr %s853, 8
      %s855 = scalar_lea.vmem %s5, %s854
      %p856 = scmp.lt.s32.totalorder %s23, 1
      %s857 = scalar_select %p856, %s23, 1
      %p858 = scmp.lt.s32.totalorder %s24, 0
      %s859 = scalar_select %p858, %s24, 0
      %s860 = sadd.s32 %s859, %s857
      %s861 = smul.addr %s860, 8
      %s862 = scalar_lea.vmem %s6, %s861
      // Predicated region
      $region49: #{tpu_custom_call.1} parent=39 // pred_check
        %p863 = pneg %p193
      $region50: #{tpu_custom_call.1} parent=39 // pred_check_branch
        %865 = sbr.rel (%p863) target = $region52
      $region51: #{tpu_custom_call.1} parent=39 // pred_region
        _
      $region52: #{tpu_custom_call.1} parent=39 // pred_fallthru
        _
      // Predicated region
      $region53: #{tpu_custom_call.1} parent=39 // pred_check
        %p866 = pneg %p221
      $region54: #{tpu_custom_call.1} parent=39 // pred_check_branch
        %868 = sbr.rel (%p866) target = $region56
      $region55: #{tpu_custom_call.1} parent=39 // pred_region
        _
      $region56: #{tpu_custom_call.1} parent=39 // pred_fallthru
        _
    $region40: #{tpu_custom_call.1} parent=5 // pred_fallthru
      _
    %p869 = scmp.le.s32.totalorder 2, %s13
    // Predicated region
    $region57: #{tpu_custom_call.1} parent=5 // pred_check
      %p870 = pneg %p869
    $region58: #{tpu_custom_call.1} parent=5 // pred_check_branch
      %872 = sbr.rel (%p870) target = $region60
    $region59: #{tpu_custom_call.1} parent=5 // pred_region
      %s873 = ssub.s32 %s13, 2
      // Predicated region
      $region61: #{tpu_custom_call.1} parent=59 // pred_check
        %p874 = pneg %p199
      $region62: #{tpu_custom_call.1} parent=59 // pred_check_branch
        %876 = sbr.rel (%p874) target = $region64
      $region63: #{tpu_custom_call.1} parent=59 // pred_region
        %p877 = scmp.lt.s32.totalorder %s26, 1
        %s878 = scalar_select %p877, %s26, 1
        %p879 = scmp.lt.s32.totalorder %s27, 0
        %s880 = scalar_select %p879, %s27, 0
        %s881 = sadd.s32 %s880, %s878
        %s882 = smul.addr %s881, 8
        %s883 = scalar_lea.vmem %s5, %s882
      $region64: #{tpu_custom_call.1} parent=59 // pred_fallthru
        _
      // Predicated region
      $region65: #{tpu_custom_call.1} parent=59 // pred_check
        %p884 = pneg %p227
      $region66: #{tpu_custom_call.1} parent=59 // pred_check_branch
        %886 = sbr.rel (%p884) target = $region68
      $region67: #{tpu_custom_call.1} parent=59 // pred_region
        %p887 = scmp.lt.s32.totalorder %s26, 1
        %s888 = scalar_select %p887, %s26, 1
        %p889 = scmp.lt.s32.totalorder %s27, 0
        %s890 = scalar_select %p889, %s27, 0
        %s891 = sadd.s32 %s890, %s888
        %s892 = smul.addr %s891, 8
        %s893 = scalar_lea.vmem %s6, %s892
      $region68: #{tpu_custom_call.1} parent=59 // pred_fallthru
        _
    $region60: #{tpu_custom_call.1} parent=5 // pred_fallthru
      _
  $region6: #{tpu_custom_call.1} parent=0 // loop_footer
    %s17 = sadd.s32 1, %s13
  $region7: #{tpu_custom_call.1} parent=0 // loop_footer_branch
    %12 = sbr.rel target = $region3
  $region8: #{tpu_custom_call.1} parent=0 // loop_exit
    _

</llo_original>
